<compile_context>
chip_gen: v6e
topology: v6e:2x2x1
jax: 0.10.0
libtpu: 0.0.40
codegen_flags: <defaults>
</compile_context>

<pallas_src>
import functools

import jax
import jax.numpy as jnp
from jax.experimental import pallas as pl
from jax.experimental.pallas import tpu as pltpu


def _round_up(x, m):
    return ((x + m - 1) // m) * m


def _mlp_kernel(x_ref, w_ref, b_ref, g_ref, beta_ref, o_ref, acc_ref,
                *, use_norm, eps, valid_h):
    k = pl.program_id(1)

    @pl.when(k == 0)
    def _init():
        acc_ref[...] = jnp.zeros_like(acc_ref)

    # Native-dtype operands straight into the MXU, f32 accumulation.
    acc_ref[...] += jnp.dot(x_ref[...], w_ref[...],
                            preferred_element_type=jnp.float32)

    @pl.when(k == pl.num_programs(1) - 1)
    def _epilogue():
        h = acc_ref[...] + b_ref[...].astype(jnp.float32)
        h_pad = h.shape[-1]
        if use_norm:
            if valid_h == h_pad:
                mean = jnp.mean(h, axis=-1, keepdims=True)
                diff = h - mean
                var = jnp.mean(diff * diff, axis=-1, keepdims=True)
            else:
                # Mask out padded hidden lanes so LN statistics match logical H.
                lane = jax.lax.broadcasted_iota(jnp.int32, h.shape, 1)
                mask = lane < valid_h
                inv_n = 1.0 / float(valid_h)
                hm = jnp.where(mask, h, 0.0)
                mean = jnp.sum(hm, axis=-1, keepdims=True) * inv_n
                diff = jnp.where(mask, h - mean, 0.0)
                var = jnp.sum(diff * diff, axis=-1, keepdims=True) * inv_n
            # Fold gamma * rsqrt(var + eps) into one scale (rsqrt -> EUP path).
            scale = g_ref[...].astype(jnp.float32) * jax.lax.rsqrt(var + eps)
            h = diff * scale + beta_ref[...].astype(jnp.float32)
            h = jnp.maximum(h, 0.0)
        # use_norm=False: Linear only (matches the PyTorch module exactly).
        o_ref[...] = h.astype(o_ref.dtype)


def mlp_simple_forward(x, w, b, gamma, beta, *, use_norm=True, eps=1e-5,
                       block_b=256, block_k=512):
    """x: [B, D_in]; w: [D_in, H]; b, gamma, beta: [H]. Returns [B, H]."""
    B, D_in = x.shape
    H = w.shape[1]

    tb = min(block_b, _round_up(B, 8))          # batch tile (8-sublane aligned)
    tk = min(block_k, _round_up(D_in, 128))     # K tile (128-lane aligned)
    B_pad = _round_up(B, tb)
    K_pad = _round_up(D_in, tk)
    H_pad = _round_up(H, 128)                   # lane-dense output

    # Zero padding: padded K contributes nothing to the matmul, padded H lanes
    # are masked in LN and sliced away, padded batch rows are sliced away.
    xp = jnp.pad(x, ((0, B_pad - B), (0, K_pad - D_in)))
    wp = jnp.pad(w, ((0, K_pad - D_in), (0, H_pad - H)))
    bp = jnp.pad(b, (0, H_pad - H)).reshape(1, H_pad)
    gp = jnp.pad(gamma, (0, H_pad - H)).reshape(1, H_pad)
    betap = jnp.pad(beta, (0, H_pad - H)).reshape(1, H_pad)

    grid = (B_pad // tb, K_pad // tk)
    kernel = functools.partial(_mlp_kernel, use_norm=use_norm, eps=eps, valid_h=H)

    out = pl.pallas_call(
        kernel,
        out_shape=jax.ShapeDtypeStruct((B_pad, H_pad), x.dtype),
        grid=grid,
        in_specs=[
            pl.BlockSpec((tb, tk), lambda i, k: (i, k)),        # x tile
            pl.BlockSpec((tk, H_pad), lambda i, k: (k, 0)),     # w tile (k only)
            pl.BlockSpec((1, H_pad), lambda i, k: (0, 0)),      # bias
            pl.BlockSpec((1, H_pad), lambda i, k: (0, 0)),      # gamma
            pl.BlockSpec((1, H_pad), lambda i, k: (0, 0)),      # beta
        ],
        out_specs=pl.BlockSpec((tb, H_pad), lambda i, k: (i, 0)),
        scratch_shapes=[pltpu.VMEM((tb, H_pad), jnp.float32)],
        compiler_params=pltpu.CompilerParams(
            dimension_semantics=("parallel", "arbitrary"),
            vmem_limit_bytes=64 * 1024 * 1024,
        ),
    )(xp, wp, bp, gp, betap)

    return out[:B, :H]


def init_params(key, input_dim, hidden_dim, dtype=jnp.float32):
    # Mimics nn.Linear's uniform(-1/sqrt(fan_in), 1/sqrt(fan_in)) init.
    kw, kb = jax.random.split(key)
    bound = 1.0 / jnp.sqrt(input_dim)
    # Stored as [input_dim, hidden_dim] (transpose of torch's [hidden, input]).
    w = jax.random.uniform(kw, (input_dim, hidden_dim), dtype, -bound, bound)
    b = jax.random.uniform(kb, (hidden_dim,), dtype, -bound, bound)
    gamma = jnp.ones((hidden_dim,), dtype)   # nn.LayerNorm weight
    beta = jnp.zeros((hidden_dim,), dtype)   # nn.LayerNorm bias
    return w, b, gamma, beta


def _reference(x, w, b, gamma, beta, *, use_norm, eps=1e-5):
    h = jnp.dot(x, w, precision=jax.lax.Precision.HIGHEST) + b
    if use_norm:
        mean = h.mean(axis=-1, keepdims=True)
        var = ((h - mean) ** 2).mean(axis=-1, keepdims=True)
        h = (h - mean) / jnp.sqrt(var + eps) * gamma + beta
        h = jnp.maximum(h, 0.0)
    return h


if __name__ == "__main__":
    key = jax.random.PRNGKey(0)
    kx, kp = jax.random.split(key)

    # Small shapes implied by the module.
    batch, input_dim, hidden_dim = 8, 32, 32
    x = jax.random.normal(kx, (batch, input_dim), jnp.float32)
    w, b, gamma, beta = init_params(kp, input_dim, hidden_dim)

    out = jax.block_until_ready(
        mlp_simple_forward(x, w, b, gamma, beta, use_norm=True))
    ref = _reference(x, w, b, gamma, beta, use_norm=True)
    assert jnp.allclose(out, ref, atol=1e-4, rtol=1e-4), "mismatch (use_norm=True)"

    out_nonorm = jax.block_until_ready(
        mlp_simple_forward(x, w, b, gamma, beta, use_norm=False))
    ref_nonorm = _reference(x, w, b, gamma, beta, use_norm=False)
    assert jnp.allclose(out_nonorm, ref_nonorm, atol=1e-4, rtol=1e-4), \
        "mismatch (use_norm=False)"

    # Larger shape that exercises multiple batch tiles + padding paths.
    B2, D2, H2 = 300, 384, 256
    x2 = jax.random.normal(jax.random.PRNGKey(1), (B2, D2), jnp.float32)
    w2, b2, g2, be2 = init_params(jax.random.PRNGKey(2), D2, H2)
    out2 = jax.block_until_ready(
        mlp_simple_forward(x2, w2, b2, g2, be2, use_norm=True))
    ref2 = _reference(x2, w2, b2, g2, be2, use_norm=True)
    assert jnp.allclose(out2, ref2, atol=2e-3, rtol=2e-3), "mismatch (large shape)"

    print("KERNEL_OK")
</pallas_src>

<mosaic_0001>
module attributes {stable_mosaic.version = 11 : i64} {
  func.func @_mlp_kernel(%arg0: i32, %arg1: i32, %arg2: memref<8x128xf32, #tpu.memory_space<vmem>>, %arg3: memref<128x128xf32, #tpu.memory_space<vmem>>, %arg4: memref<1x128xf32, #tpu.memory_space<vmem>>, %arg5: memref<1x128xf32, #tpu.memory_space<vmem>>, %arg6: memref<1x128xf32, #tpu.memory_space<vmem>>, %arg7: memref<8x128xf32, #tpu.memory_space<vmem>>, %arg8: memref<8x128xf32, #tpu.memory_space<vmem>>) attributes {dimension_semantics = [#tpu.dimension_semantics<parallel>, #tpu.dimension_semantics<arbitrary>], iteration_bounds = array<i64: 1, 1>, scalar_prefetch = 0 : i64, scratch_operands = 1 : i64, tpu.core_type = #tpu.core_type<tc>, window_params = [{transform_indices = @transform_0, window_bounds = array<i64: 8, 128>}, {transform_indices = @transform_1, window_bounds = array<i64: 128, 128>}, {pipeline_mode = #tpu.pipeline_mode<synchronous>, transform_indices = @transform_2, window_bounds = array<i64: 1, 128>}, {pipeline_mode = #tpu.pipeline_mode<synchronous>, transform_indices = @transform_3, window_bounds = array<i64: 1, 128>}, {pipeline_mode = #tpu.pipeline_mode<synchronous>, transform_indices = @transform_4, window_bounds = array<i64: 1, 128>}, {transform_indices = @transform_5, window_bounds = array<i64: 8, 128>}]} {
    %c0_i32 = arith.constant 0 : i32
    %0 = arith.cmpi eq, %arg1, %c0_i32 : i32
    %1 = arith.extui %0 : i1 to i32
    %c0_i32_0 = arith.constant 0 : i32
    %2 = arith.cmpi ne, %1, %c0_i32_0 : i32
    scf.if %2 {
      %cst_10 = arith.constant 0.000000e+00 : f32
      %12 = vector.broadcast %cst_10 : f32 to vector<8x128xf32>
      %c0_11 = arith.constant 0 : index
      %c0_12 = arith.constant 0 : index
      %13 = vector.load %arg8[%c0_11, %c0_12] : memref<8x128xf32, #tpu.memory_space<vmem>>, vector<8x128xf32>
      tpu.vector_store %arg8[%c0_11, %c0_12], %12 {strides = array<i32>} : memref<8x128xf32, #tpu.memory_space<vmem>>, vector<8x128xf32>,
    } else {
    }
    %c0 = arith.constant 0 : index
    %c0_1 = arith.constant 0 : index
    %3 = vector.load %arg8[%c0, %c0_1] : memref<8x128xf32, #tpu.memory_space<vmem>>, vector<8x128xf32>
    %c0_2 = arith.constant 0 : index
    %c0_3 = arith.constant 0 : index
    %4 = vector.load %arg2[%c0_2, %c0_3] : memref<8x128xf32, #tpu.memory_space<vmem>>, vector<8x128xf32>
    %c0_4 = arith.constant 0 : index
    %c0_5 = arith.constant 0 : index
    %5 = vector.load %arg3[%c0_4, %c0_5] : memref<128x128xf32, #tpu.memory_space<vmem>>, vector<128x128xf32>
    %cst = arith.constant dense<0.000000e+00> : vector<8x128xf32>
    %6 = tpu.matmul %4, %5, %cst {dimension_numbers = #tpu.dot_dimension_numbers<[1], [0], [0], [1], [0, 0, 1, 1], [], []>} : vector<8x128xf32>, vector<128x128xf32>, vector<8x128xf32> -> vector<8x128xf32>
    %7 = arith.addf %3, %6 : vector<8x128xf32>
    %c0_6 = arith.constant 0 : index
    %c0_7 = arith.constant 0 : index
    %8 = vector.load %arg8[%c0_6, %c0_7] : memref<8x128xf32, #tpu.memory_space<vmem>>, vector<8x128xf32>
    tpu.vector_store %arg8[%c0_6, %c0_7], %7 {strides = array<i32>} : memref<8x128xf32, #tpu.memory_space<vmem>>, vector<8x128xf32>,
    %c0_i32_8 = arith.constant 0 : i32
    %9 = arith.cmpi eq, %arg1, %c0_i32_8 : i32
    %10 = arith.extui %9 : i1 to i32
    %c0_i32_9 = arith.constant 0 : i32
    %11 = arith.cmpi ne, %10, %c0_i32_9 : i32
    scf.if %11 {
      %c0_10 = arith.constant 0 : index
      %c0_11 = arith.constant 0 : index
      %12 = vector.load %arg8[%c0_10, %c0_11] : memref<8x128xf32, #tpu.memory_space<vmem>>, vector<8x128xf32>
      %c0_12 = arith.constant 0 : index
      %c0_13 = arith.constant 0 : index
      %13 = vector.load %arg4[%c0_12, %c0_13] : memref<1x128xf32, #tpu.memory_space<vmem>>, vector<1x128xf32>
      %14 = vector.broadcast %13 : vector<1x128xf32> to vector<8x128xf32>
      %15 = arith.addf %12, %14 : vector<8x128xf32>
      %16 = tpu.iota {dimensions = array<i32: 1>} : vector<8x128xi32>
      %c32_i32 = arith.constant 32 : i32
      %17 = vector.broadcast %c32_i32 : i32 to vector<8x128xi32>
      %18 = arith.cmpi slt, %16, %17 : vector<8x128xi32>
      %cst_14 = arith.constant 0.000000e+00 : f32
      %19 = vector.broadcast %cst_14 : f32 to vector<8x128xf32>
      %20 = arith.select %18, %15, %19 : vector<8x128xi1>, vector<8x128xf32>
      %cst_15 = arith.constant dense<0.000000e+00> : vector<8xf32>
      %21 = vector.multi_reduction <add>, %20, %cst_15 [1] : vector<8x128xf32> to vector<8xf32>
      %22 = vector.shape_cast %21 : vector<8xf32> to vector<8x1xf32>
      %cst_16 = arith.constant 3.125000e-02 : f32
      %23 = vector.broadcast %cst_16 : f32 to vector<8x1xf32>
      %24 = arith.mulf %22, %23 : vector<8x1xf32>
      %25 = vector.broadcast %24 : vector<8x1xf32> to vector<8x128xf32>
      %26 = arith.subf %15, %25 : vector<8x128xf32>
      %cst_17 = arith.constant 0.000000e+00 : f32
      %27 = vector.broadcast %cst_17 : f32 to vector<8x128xf32>
      %28 = arith.select %18, %26, %27 : vector<8x128xi1>, vector<8x128xf32>
      %29 = arith.mulf %28, %28 : vector<8x128xf32>
      %cst_18 = arith.constant dense<0.000000e+00> : vector<8xf32>
      %30 = vector.multi_reduction <add>, %29, %cst_18 [1] : vector<8x128xf32> to vector<8xf32>
      %31 = vector.shape_cast %30 : vector<8xf32> to vector<8x1xf32>
      %cst_19 = arith.constant 3.125000e-02 : f32
      %32 = vector.broadcast %cst_19 : f32 to vector<8x1xf32>
      %33 = arith.mulf %31, %32 : vector<8x1xf32>
      %c0_20 = arith.constant 0 : index
      %c0_21 = arith.constant 0 : index
      %34 = vector.load %arg5[%c0_20, %c0_21] : memref<1x128xf32, #tpu.memory_space<vmem>>, vector<1x128xf32>
      %cst_22 = arith.constant 9.99999974E-6 : f32
      %35 = vector.broadcast %cst_22 : f32 to vector<8x1xf32>
      %36 = arith.addf %33, %35 : vector<8x1xf32>
      %37 = math.rsqrt %36 : vector<8x1xf32>
      %38 = vector.broadcast %34 : vector<1x128xf32> to vector<8x128xf32>
      %39 = vector.broadcast %37 : vector<8x1xf32> to vector<8x128xf32>
      %40 = arith.mulf %38, %39 : vector<8x128xf32>
      %41 = arith.mulf %28, %40 : vector<8x128xf32>
      %c0_23 = arith.constant 0 : index
      %c0_24 = arith.constant 0 : index
      %42 = vector.load %arg6[%c0_23, %c0_24] : memref<1x128xf32, #tpu.memory_space<vmem>>, vector<1x128xf32>
      %43 = vector.broadcast %42 : vector<1x128xf32> to vector<8x128xf32>
      %44 = arith.addf %41, %43 : vector<8x128xf32>
      %cst_25 = arith.constant 0.000000e+00 : f32
      %45 = vector.broadcast %cst_25 : f32 to vector<8x128xf32>
      %46 = arith.maximumf %44, %45 : vector<8x128xf32>
      %c0_26 = arith.constant 0 : index
      %c0_27 = arith.constant 0 : index
      %47 = vector.load %arg7[%c0_26, %c0_27] : memref<8x128xf32, #tpu.memory_space<vmem>>, vector<8x128xf32>
      tpu.vector_store %arg7[%c0_26, %c0_27], %46 {strides = array<i32>} : memref<8x128xf32, #tpu.memory_space<vmem>>, vector<8x128xf32>,
    } else {
    }
    return
  }
  func.func @transform_0(%arg0: i32, %arg1: i32) -> (i32, i32) {
    %c0_i32 = arith.constant 0 : i32
    return %arg0, %arg1 : i32, i32
  }
  func.func @transform_1(%arg0: i32, %arg1: i32) -> (i32, i32) {
    %c0_i32 = arith.constant 0 : i32
    %c0_i32_0 = arith.constant 0 : i32
    return %arg1, %c0_i32 : i32, i32
  }
  func.func @transform_2(%arg0: i32, %arg1: i32) -> (i32, i32) {
    %c0_i32 = arith.constant 0 : i32
    %c0_i32_0 = arith.constant 0 : i32
    %c0_i32_1 = arith.constant 0 : i32
    return %c0_i32, %c0_i32_0 : i32, i32
  }
  func.func @transform_3(%arg0: i32, %arg1: i32) -> (i32, i32) {
    %c0_i32 = arith.constant 0 : i32
    %c0_i32_0 = arith.constant 0 : i32
    %c0_i32_1 = arith.constant 0 : i32
    return %c0_i32, %c0_i32_0 : i32, i32
  }
  func.func @transform_4(%arg0: i32, %arg1: i32) -> (i32, i32) {
    %c0_i32 = arith.constant 0 : i32
    %c0_i32_0 = arith.constant 0 : i32
    %c0_i32_1 = arith.constant 0 : i32
    return %c0_i32, %c0_i32_0 : i32, i32
  }
  func.func @transform_5(%arg0: i32, %arg1: i32) -> (i32, i32) {
    %c0_i32 = arith.constant 0 : i32
    %c0_i32_0 = arith.constant 0 : i32
    return %arg0, %c0_i32 : i32, i32
  }
}

</mosaic_0001>

<llo_original>
// kernel: tpu_custom_call.1
$region0: #{tpu_custom_call.1}
  #allocation0 [shape = 'u32[]', space=smem, size = 0x4, offset = 0x4, fixed_abs, tag = 'smem constant byte address 0x4 - core index']
  #allocation1 [shape = 'u32[144,128]{1,0:T(1,128)}', space=vmem, size = 0x12000, scoped, tag = 'internal scratch']
  #allocation2 [shape = 'f32[8,128]{1,0:T(8,128)}', space=vmem, size = 0x1000, scoped, tag = 'scratch operand']
  %s0 = inlined_call_operand.hbm [shape: f32[8,128], index: 0, kind: input, shape index: {}]
  %s1 = inlined_call_operand.hbm [shape: f32[128,128], index: 1, kind: input, shape index: {}]
  %s2 = inlined_call_operand.vmem [shape: f32[1,128], index: 2, kind: input, shape index: {}]
  %s3 = inlined_call_operand.vmem [shape: f32[1,128], index: 3, kind: input, shape index: {}]
  %s4 = inlined_call_operand.vmem [shape: f32[1,128], index: 4, kind: input, shape index: {}]
  %s5 = inlined_call_operand.hbm [shape: f32[8,128], index: 5, kind: output, shape index: {}]
  %s6 = sld [smem:[#allocation0]]
  $region46: #{tpu_custom_call.1} parent=0
    _
  %s8 = ssub.s32 1, %s6
  %s9 = scalar_select 0, %s8, %s6
  $region1: #{tpu_custom_call.1} parent=0
    #allocation3 [shape = 'u8[4096]{0}', space=vmem, size = 0x1000, scoped, tag = 'input window, operand 0, single buffered']
    #allocation4 [shape = 's32[1]{0}', space=sflag, size = 0x4, scoped, tag = 'scoped memory for tpu_custom_call.1']
    #allocation5 [shape = 's32[1]{0}', space=sflag, size = 0x4, scoped, tag = 'scoped memory for tpu_custom_call.1']
    #allocation6 [shape = 'u8[65536]{0}', space=vmem, size = 0x10000, scoped, tag = 'input window, operand 1, single buffered']
    #allocation7 [shape = 's32[1]{0}', space=sflag, size = 0x4, scoped, tag = 'scoped memory for tpu_custom_call.1']
    #allocation8 [shape = 'u8[4096]{0}', space=vmem, size = 0x1000, scoped, tag = 'output window, operand 0, single buffered']
    %10 = vsyncpa [#allocation4], 0
    %11 = vsyncpa [#allocation7], 0
    %12 = vsyncpa [#allocation5], 0
    // Predicated region
    $region2: #{tpu_custom_call.1} parent=1 // pred_check
      _
    $region3: #{tpu_custom_call.1} parent=1 // pred_check_branch
      %14 = sbr.rel (0) target = $region5
    $region4: #{tpu_custom_call.1} parent=1 // pred_region
      %s16 = ssub.s32 128, 128
      %17 = vsyncadd [#allocation4], %s16
      %s19 = sshll.u32 [#allocation3], 4
      %s20 = int_to_ptr.vmem [resolvable:$true] %s19
      %22 = dma.hbm_to_vmem [thread:$0]  %s0, 128, %s20, [#allocation4]
    $region5: #{tpu_custom_call.1} parent=1 // pred_fallthru
      _
    // Predicated region
    $region6: #{tpu_custom_call.1} parent=1 // pred_check
      _
    $region7: #{tpu_custom_call.1} parent=1 // pred_check_branch
      %24 = sbr.rel (0) target = $region9
    $region8: #{tpu_custom_call.1} parent=1 // pred_region
      %s26 = ssub.s32 2048, 2048
      %27 = vsyncadd [#allocation7], %s26
      %s28 = sshll.u32 [#allocation6], 4
      %s29 = int_to_ptr.vmem [resolvable:$true] %s28
      %34 = dma.hbm_to_vmem [thread:$0]  %s1, 2048, %s29, [#allocation7], 128, 128, 8
    $region9: #{tpu_custom_call.1} parent=1 // pred_fallthru
      _
    // Predicated region
    $region10: #{tpu_custom_call.1} parent=1 // pred_check
      _
    $region11: #{tpu_custom_call.1} parent=1 // pred_check_branch
      %36 = sbr.rel (0) target = $region13
    $region12: #{tpu_custom_call.1} parent=1 // pred_region
      _
    $region13: #{tpu_custom_call.1} parent=1 // pred_fallthru
      _
    // Predicated region
    $region14: #{tpu_custom_call.1} parent=1 // pred_check
      _
    $region15: #{tpu_custom_call.1} parent=1 // pred_check_branch
      %38 = sbr.rel (0) target = $region17
    $region16: #{tpu_custom_call.1} parent=1 // pred_region
      _
    $region17: #{tpu_custom_call.1} parent=1 // pred_fallthru
      _
    // Predicated region
    $region18: #{tpu_custom_call.1} parent=1 // pred_check
      _
    $region19: #{tpu_custom_call.1} parent=1 // pred_check_branch
      %40 = sbr.rel (0) target = $region21
    $region20: #{tpu_custom_call.1} parent=1 // pred_region
      _
    $region21: #{tpu_custom_call.1} parent=1 // pred_fallthru
      _
    // Predicated region
    $region22: #{tpu_custom_call.1} parent=1 // pred_check
      _
    $region23: #{tpu_custom_call.1} parent=1 // pred_check_branch
      %42 = sbr.rel (0) target = $region25
    $region24: #{tpu_custom_call.1} parent=1 // pred_region
      %43 = dma.done [#allocation4], 128
    $region25: #{tpu_custom_call.1} parent=1 // pred_fallthru
      _
    // Predicated region
    $region26: #{tpu_custom_call.1} parent=1 // pred_check
      _
    $region27: #{tpu_custom_call.1} parent=1 // pred_check_branch
      %45 = sbr.rel (0) target = $region29
    $region28: #{tpu_custom_call.1} parent=1 // pred_region
      %46 = dma.done [#allocation7], 2048
    $region29: #{tpu_custom_call.1} parent=1 // pred_fallthru
      _
    %p47 = scmp.eq.s32.totalorder 0, 0
    // Predicated region
    $region30: #{tpu_custom_call.1} parent=1 // pred_check
      %p48 = pneg %p47
    $region31: #{tpu_custom_call.1} parent=1 // pred_check_branch
      %50 = sbr.rel (%p48) target = $region33
    $region32: #{tpu_custom_call.1} parent=1 // pred_region
      %51 = vst [vmem:[#allocation2] sm:$0xff] 0.0
    $region33: #{tpu_custom_call.1} parent=1 // pred_fallthru
      _
    %v52 = vld [vmem:[#allocation2] sm:$0xff]
    %v53 = vld [vmem:[#allocation3] sm:$0xff]
    %v54 = vld [vmem:[#allocation6] sm:$0xff]
    %v55 = vld [vmem:[#allocation6 + $0x8] sm:$0xff]
    %v56 = vld [vmem:[#allocation6 + $0x10] sm:$0xff]
    %v57 = vld [vmem:[#allocation6 + $0x18] sm:$0xff]
    %v58 = vld [vmem:[#allocation6 + $0x20] sm:$0xff]
    %v59 = vld [vmem:[#allocation6 + $0x28] sm:$0xff]
    %v60 = vld [vmem:[#allocation6 + $0x30] sm:$0xff]
    %v61 = vld [vmem:[#allocation6 + $0x38] sm:$0xff]
    %v62 = vld [vmem:[#allocation6 + $0x40] sm:$0xff]
    %v63 = vld [vmem:[#allocation6 + $0x48] sm:$0xff]
    %v64 = vld [vmem:[#allocation6 + $0x50] sm:$0xff]
    %v65 = vld [vmem:[#allocation6 + $0x58] sm:$0xff]
    %v66 = vld [vmem:[#allocation6 + $0x60] sm:$0xff]
    %v67 = vld [vmem:[#allocation6 + $0x68] sm:$0xff]
    %v68 = vld [vmem:[#allocation6 + $0x70] sm:$0xff]
    %v69 = vld [vmem:[#allocation6 + $0x78] sm:$0xff]
    %70 = vmatprep.subr.mxu0 0.0
    %71 = vmatpush1.msra.mxu0 %v69
    %72 = vmatprep.subr.mxu0 0.0
    %73 = vmatpush1.msra.mxu0 %v68
    %74 = vmatprep.subr.mxu0 0.0
    %75 = vmatpush1.msra.mxu0 %v67
    %76 = vmatprep.subr.mxu0 0.0
    %77 = vmatpush1.msra.mxu0 %v66
    %78 = vmatprep.subr.mxu0 0.0
    %79 = vmatpush1.msra.mxu0 %v65
    %80 = vmatprep.subr.mxu0 0.0
    %81 = vmatpush1.msra.mxu0 %v64
    %82 = vmatprep.subr.mxu0 0.0
    %83 = vmatpush1.msra.mxu0 %v63
    %84 = vmatprep.subr.mxu0 0.0
    %85 = vmatpush1.msra.mxu0 %v62
    %86 = vmatprep.subr.mxu0 0.0
    %87 = vmatpush1.msra.mxu0 %v61
    %88 = vmatprep.subr.mxu0 0.0
    %89 = vmatpush1.msra.mxu0 %v60
    %90 = vmatprep.subr.mxu0 0.0
    %91 = vmatpush1.msra.mxu0 %v59
    %92 = vmatprep.subr.mxu0 0.0
    %93 = vmatpush1.msra.mxu0 %v58
    %94 = vmatprep.subr.mxu0 0.0
    %95 = vmatpush1.msra.mxu0 %v57
    %96 = vmatprep.subr.mxu0 0.0
    %97 = vmatpush1.msra.mxu0 %v56
    %98 = vmatprep.subr.mxu0 0.0
    %99 = vmatpush1.msra.mxu0 %v55
    %100 = vmatprep.subr.mxu0 0.0
    %101 = vmatpush1.msra.mxu0 %v54
    %102 = vmatprep.subr.mxu0 0.0
    %103 = vmatpush2.msra.mxu0 0.0
    %104 = vmatprep.subr.mxu0 0.0
    %105 = vmatpush2.msra.mxu0 0.0
    %106 = vmatprep.subr.mxu0 0.0
    %107 = vmatpush2.msra.mxu0 0.0
    %108 = vmatprep.subr.mxu0 0.0
    %109 = vmatpush2.msra.mxu0 0.0
    %110 = vmatprep.subr.mxu0 0.0
    %111 = vmatpush2.msra.mxu0 0.0
    %112 = vmatprep.subr.mxu0 0.0
    %113 = vmatpush2.msra.mxu0 0.0
    %114 = vmatprep.subr.mxu0 0.0
    %115 = vmatpush2.msra.mxu0 0.0
    %116 = vmatprep.subr.mxu0 0.0
    %117 = vmatpush2.msra.mxu0 0.0
    %118 = vmatprep.subr.mxu0 0.0
    %119 = vmatpush2.msra.mxu0 0.0
    %120 = vmatprep.subr.mxu0 0.0
    %121 = vmatpush2.msra.mxu0 0.0
    %122 = vmatprep.subr.mxu0 0.0
    %123 = vmatpush2.msra.mxu0 0.0
    %124 = vmatprep.subr.mxu0 0.0
    %125 = vmatpush2.msra.mxu0 0.0
    %126 = vmatprep.subr.mxu0 0.0
    %127 = vmatpush2.msra.mxu0 0.0
    %128 = vmatprep.subr.mxu0 0.0
    %129 = vmatpush2.msra.mxu0 0.0
    %130 = vmatprep.subr.mxu0 0.0
    %131 = vmatpush2.msra.mxu0 0.0
    %132 = vmatprep.subr.mxu0 0.0
    %133 = vmatpush2.msra.mxu0 0.0
    %134 = vmatprep.mubr.f32.mxu0 0.0
    %135 = vmatmul.mubr.f32.gmra.mxu0 %v53
    %v136 = vpop.f32.mrf.mxu0
    %v137 = vadd.f32 0.0, %v136
    %v138 = vpop.f32.mrf.mxu0
    %139 = vdwg.mxu0
    %v140 = vadd.f32 %v52, %v137
    %141 = vst [vmem:[#allocation2] sm:$0xff] %v140
    // Predicated region
    $region34: #{tpu_custom_call.1} parent=1 // pred_check
      %p142 = pneg %p47
    $region35: #{tpu_custom_call.1} parent=1 // pred_check_branch
      %144 = sbr.rel (%p142) target = $region37
    $region36: #{tpu_custom_call.1} parent=1 // pred_region
      %v145 = vld [vmem:[#allocation2] sm:$0xff]
      %v146 = vld [vmem:[%s2] sm:$0x1]
      %v148 = vlaneseq
      %v149 = vshrl.u32 %v148, 7
      %v150 = vsub.s32 0, %v149
      %v151 = vrot.slane %v146, %v150
      %v153 = vadd.f32 %v145, %v151
      %v154 = vlaneseq
      %v155 = vand.u32 %v154, 127
      %vm156 = vcmp.lt.s32.totalorder %v155, 32
      %v157 = vsel %vm156, %v153, 0.0
      %158 = vadd.xlane.f32.xlu0 %v157
      %v159 = vpop.xlane.xlu0 %158
      %v160 = vmul.f32 %v159, 0.03125
      %v161 = vsub.f32 %v153, %v160
      %v162 = vsel %vm156, %v161, 0.0
      %v163 = vmul.f32 %v162, %v162
      %164 = vadd.xlane.f32.xlu0 %v163
      %v165 = vpop.xlane.xlu0 %164
      %v166 = vmul.f32 %v165, 0.03125
      %v167 = vld [vmem:[%s3] sm:$0x1]
      %v168 = vadd.f32 %v166, 1e-05
      %v169 = vrsqrt.pop %v168
      %v171 = vlaneseq
      %v172 = vshrl.u32 %v171, 7
      %v173 = vsub.s32 0, %v172
      %v174 = vrot.slane %v167, %v173
      %v176 = vmul.f32 %v174, %v169
      %v177 = vmul.f32 %v162, %v176
      %v178 = vld [vmem:[%s4] sm:$0x1]
      %v180 = vlaneseq
      %v181 = vshrl.u32 %v180, 7
      %v182 = vsub.s32 0, %v181
      %v183 = vrot.slane %v178, %v182
      %v185 = vadd.f32 %v177, %v183
      %v186 = vmax.f32 %v185, 0.0
      %187 = vst [vmem:[#allocation8] sm:$0xff] %v186
    $region37: #{tpu_custom_call.1} parent=1 // pred_fallthru
      _
    // Predicated region
    $region38: #{tpu_custom_call.1} parent=1 // pred_check
      _
    $region39: #{tpu_custom_call.1} parent=1 // pred_check_branch
      %189 = sbr.rel (0) target = $region41
    $region40: #{tpu_custom_call.1} parent=1 // pred_region
      %s191 = ssub.s32 128, 128
      %192 = vsyncadd [#allocation5], %s191
      %s194 = sshll.u32 [#allocation8], 4
      %s195 = int_to_ptr.vmem [resolvable:$true] %s194
      %197 = dma.vmem_to_hbm [thread:$0]  %s195, 128, %s5, [#allocation5]
    $region41: #{tpu_custom_call.1} parent=1 // pred_fallthru
      _
    // Predicated region
    $region42: #{tpu_custom_call.1} parent=1 // pred_check
      _
    $region43: #{tpu_custom_call.1} parent=1 // pred_check_branch
      %199 = sbr.rel (0) target = $region45
    $region44: #{tpu_custom_call.1} parent=1 // pred_region
      %200 = dma.done [#allocation5], 128
    $region45: #{tpu_custom_call.1} parent=1 // pred_fallthru
      _
    %201 = vsyncpa [#allocation4], 1
    %202 = vsyncpa [#allocation7], 1
    %203 = vsyncpa [#allocation5], 1

</llo_original>
